<compile_context>
chip_gen: v7x
topology: tpu7x:2x2x1
jax: 0.10.0
libtpu: 0.0.40
codegen_flags: <defaults>
</compile_context>

<pallas_src>
import math
import functools

import jax
import jax.numpy as jnp
import numpy as np
from jax.experimental import pallas as pl
from jax.experimental.pallas import tpu as pltpu


NUM_BUCKETS = 8   # default of the torch module


# ---------------------------------------------------------------------------
# Kernel
# ---------------------------------------------------------------------------
def _log_prob_kernel(s_ref, p_ref, o_ref, *, num_buckets, hw_valid, hw_padded,
                     out_lanes):
    # s_ref: (1, Ct, HWp)      samples, native dtype
    # p_ref: (1, Ct, K*HWp)    logits; K = num_buckets-1 lane slabs of width HWp
    # o_ref: (1, 1, Ct, OL)    f32 lane-folded partial sums (reduced in wrapper)
    num_bits = num_buckets.bit_length() - 1
    hwp = hw_padded

    s = s_ref[0].astype(jnp.float32)                       # (Ct, HWp)
    q = (s * float(num_buckets)).astype(jnp.int32)
    # torch parity: uint8 cast + dec2bin(bits=num_bits) keeps the low bits.
    q = jnp.bitwise_and(q, num_buckets - 1)

    def load_row(k):
        # Tree row k for all channels: free, 128-aligned lane slice + f32 cast.
        return p_ref[0, :, k * hwp:(k + 1) * hwp].astype(jnp.float32)

    total = jnp.zeros(s.shape, jnp.float32)
    for x in range(num_bits):
        base = (1 << x) - 1
        prefix = q >> (num_bits - x)                       # 0 .. 2^x - 1

        def select(lo, hi):                                # binary select tree
            if hi - lo == 1:
                return load_row(base + lo)
            mid = (lo + hi) // 2
            return jnp.where(prefix < mid, select(lo, mid), select(mid, hi))

        logit = select(0, 1 << x)                          # (Ct, HWp) f32
        bit_is_one = ((q >> (num_bits - 1 - x)) & 1) > 0
        # Bernoulli(logits).log_prob(bit) = bit*logit - softplus(logit)
        #                                 = -softplus(logit if bit==0 else -logit)
        z = jnp.where(bit_is_one, -logit, logit)
        total = total - (jnp.maximum(z, 0.0)
                         + jnp.log(1.0 + jnp.exp(-jnp.abs(z))))

    if hw_padded != hw_valid:                              # mask lane padding
        col = jax.lax.broadcasted_iota(jnp.int32, s.shape, 1)
        total = jnp.where(col < hw_valid, total, 0.0)

    # Fold lanes into a lane-dense (Ct, OL) partial tile; all slices are
    # 128-aligned -> pure VPU adds, unmasked lane-dense store.
    acc = total[:, :out_lanes]
    for j in range(1, hwp // out_lanes):
        acc = acc + total[:, j * out_lanes:(j + 1) * out_lanes]
    o_ref[0, 0, :, :] = acc


# ---------------------------------------------------------------------------
# Wrapper
# ---------------------------------------------------------------------------
def _pick_channel_tile(C, per_channel_bytes, budget_bytes):
    # Block channel-dim must equal C or be a multiple of 8 ((8,128) rule).
    if C % 8 != 0:
        return C
    ct = 8
    while C % (ct * 2) == 0 and (ct * 2) * per_channel_bytes <= budget_bytes:
        ct *= 2
    return ct


def _pallas_log_prob(distribution_params, samples, num_buckets):
    B, CK, H, W = distribution_params.shape
    K = num_buckets - 1
    num_bits = int(round(math.log2(num_buckets)))
    assert (1 << num_bits) == num_buckets, "num_buckets must be a power of two"
    assert CK % K == 0
    C = CK // K
    HW = H * W
    HWp = ((HW + 127) // 128) * 128

    # Row-major reshapes only: NO transpose, NO dtype upcast in HBM.
    params = distribution_params.reshape(B, C, K, HW)
    s = samples.reshape(B, C, HW)
    if HWp != HW:
        # TODO(synk): this pad copies the arrays; only hit when H*W % 128 != 0.
        params = jnp.pad(params, ((0, 0), (0, 0), (0, 0), (0, HWp - HW)))
        s = jnp.pad(s, ((0, 0), (0, 0), (0, HWp - HW)))
    params = params.reshape(B, C, K * HWp)

    p_bytes = params.dtype.itemsize
    s_bytes = s.dtype.itemsize
    per_channel = K * HWp * p_bytes + HWp * s_bytes
    Ct = _pick_channel_tile(C, per_channel, budget_bytes=16 << 20)

    out_lanes = 128
    for cand in (2048, 1024, 512, 256, 128):
        if HWp % cand == 0:
            out_lanes = cand
            break

    p_block = Ct * K * HWp * p_bytes
    s_block = Ct * HWp * s_bytes
    o_block = Ct * out_lanes * 4
    vmem_limit = int(min(100 << 20,
                         max(32 << 20,
                             2 * (p_block + s_block + o_block) + (4 << 20))))

    kernel = functools.partial(_log_prob_kernel, num_buckets=num_buckets,
                               hw_valid=HW, hw_padded=HWp, out_lanes=out_lanes)

    partial_sums = pl.pallas_call(
        kernel,
        out_shape=jax.ShapeDtypeStruct((B, C // Ct, Ct, out_lanes), jnp.float32),
        grid_spec=pltpu.PrefetchScalarGridSpec(
            num_scalar_prefetch=0,
            grid=(B, C // Ct),
            in_specs=[
                pl.BlockSpec((1, Ct, HWp), lambda b, c: (b, c, 0)),
                pl.BlockSpec((1, Ct, K * HWp), lambda b, c: (b, c, 0)),
            ],
            out_specs=pl.BlockSpec((1, 1, Ct, out_lanes),
                                   lambda b, c: (b, c, 0, 0)),
        ),
        compiler_params=pltpu.CompilerParams(
            dimension_semantics=("parallel", "parallel"),
            vmem_limit_bytes=vmem_limit),
    )(s, params)

    return partial_sums.sum(axis=(1, 2, 3))                # (B,)


# ---------------------------------------------------------------------------
# Module-equivalent wrappers (forward() returns a distribution object).
# ---------------------------------------------------------------------------
class IndependentFactorizedQuantizedDistribution:
    def __init__(self, distribution_params, num_buckets=NUM_BUCKETS):
        self.distribution_params = distribution_params    # (B, C*(K), H, W)
        self.num_buckets = num_buckets

    def log_prob(self, samples):
        lp = _pallas_log_prob(self.distribution_params, samples,
                              self.num_buckets)
        return {'log_prob': lp}

    # TODO(synk): sample() needs sequential per-bit ancestral Bernoulli
    # sampling over the binary tree; not implemented as a Pallas kernel.


class IndependentFactorizedQuantizedLayer:
    def __init__(self, num_buckets=NUM_BUCKETS):
        self.num_buckets = num_buckets

    def __call__(self, distribution_params):
        return IndependentFactorizedQuantizedDistribution(
            distribution_params, self.num_buckets)

    def params_size(self, channels):
        return (self.num_buckets - 1) * channels


# ---------------------------------------------------------------------------
# Pure-JAX reference of the torch log_prob semantics, for validation.
# ---------------------------------------------------------------------------
def _ref_log_prob(distribution_params, samples, num_buckets):
    B, CK, H, W = distribution_params.shape
    K = num_buckets - 1
    nb = int(round(math.log2(num_buckets)))
    C = CK // K
    params = distribution_params.reshape(B, C, K, H, W).astype(jnp.float32)
    q = (samples.astype(jnp.float32) * num_buckets).astype(jnp.int32)
    q = q & (num_buckets - 1)
    lp = jnp.zeros((B,), jnp.float32)
    for x in range(nb):
        idx = (2 ** x - 1) + (q >> (nb - x))               # (B, C, H, W)
        logits = jnp.take_along_axis(params, idx[:, :, None, :, :],
                                     axis=2)[:, :, 0]
        bit = ((q >> (nb - 1 - x)) & 1).astype(jnp.float32)
        lp = lp + jnp.sum(bit * logits - jax.nn.softplus(logits),
                          axis=(1, 2, 3))
    return lp


if __name__ == "__main__":
    B, C, H, W = 2, 4, 16, 16
    layer = IndependentFactorizedQuantizedLayer(num_buckets=NUM_BUCKETS)

    key = jax.random.PRNGKey(0)
    kp, ks = jax.random.split(key)
    # Synthetic "conv output" logits in their native bf16 width (no upcast in
    # the wrapper) and samples in [0, 1).
    distribution_params = jax.random.normal(
        kp, (B, layer.params_size(C), H, W),
        dtype=jnp.float32).astype(jnp.bfloat16)
    samples = jax.random.uniform(ks, (B, C, H, W), dtype=jnp.float32)

    dist = layer(distribution_params)                      # forward()
    result = dist.log_prob(samples)['log_prob']            # Pallas hot path
    result = jax.block_until_ready(result)

    ref = jax.block_until_ready(
        _ref_log_prob(distribution_params, samples, NUM_BUCKETS))
    np.testing.assert_allclose(np.asarray(result), np.asarray(ref),
                               rtol=5e-4, atol=5e-2)
    print("KERNEL_OK")
</pallas_src>

<mosaic_0001>
module attributes {stable_mosaic.version = 11 : i64} {
  func.func @_log_prob_kernel(%arg0: i32, %arg1: i32, %arg2: memref<1x4x256xf32, #tpu.memory_space<vmem>>, %arg3: memref<1x4x1792xbf16, #tpu.memory_space<vmem>>, %arg4: memref<1x1x4x256xf32, #tpu.memory_space<vmem>>) attributes {dimension_semantics = [#tpu.dimension_semantics<parallel>, #tpu.dimension_semantics<parallel>], iteration_bounds = array<i64: 2, 1>, scalar_prefetch = 0 : i64, scratch_operands = 0 : i64, tpu.core_type = #tpu.core_type<tc>, window_params = [{transform_indices = @transform_0, window_bounds = array<i64: 1, 4, 256>}, {transform_indices = @transform_1, window_bounds = array<i64: 1, 4, 1792>}, {transform_indices = @transform_2, window_bounds = array<i64: 1, 1, 4, 256>}]} {
    %c0 = arith.constant 0 : index
    %c0_0 = arith.constant 0 : index
    %c0_1 = arith.constant 0 : index
    %0 = vector.load %arg2[%c0, %c0_0, %c0_1] : memref<1x4x256xf32, #tpu.memory_space<vmem>>, vector<1x4x256xf32>
    %1 = vector.shape_cast %0 : vector<1x4x256xf32> to vector<4x256xf32>
    %cst = arith.constant 8.000000e+00 : f32
    %2 = vector.broadcast %cst : f32 to vector<4x256xf32>
    %3 = arith.mulf %1, %2 : vector<4x256xf32>
    %4 = arith.fptosi %3 : vector<4x256xf32> to vector<4x256xi32>
    %c7_i32 = arith.constant 7 : i32
    %5 = vector.broadcast %c7_i32 : i32 to vector<4x256xi32>
    %6 = arith.andi %4, %5 : vector<4x256xi32>
    %cst_2 = arith.constant 0.000000e+00 : f32
    %7 = vector.broadcast %cst_2 : f32 to vector<4x256xf32>
    %c0_3 = arith.constant 0 : index
    %c0_4 = arith.constant 0 : index
    %c0_5 = arith.constant 0 : index
    %8 = vector.load %arg3[%c0_3, %c0_4, %c0_5] : memref<1x4x1792xbf16, #tpu.memory_space<vmem>>, vector<1x4x256xbf16>
    %9 = vector.shape_cast %8 : vector<1x4x256xbf16> to vector<4x256xbf16>
    %10 = arith.extf %9 : vector<4x256xbf16> to vector<4x256xf32>
    %c2_i32 = arith.constant 2 : i32
    %11 = vector.broadcast %c2_i32 : i32 to vector<4x256xi32>
    %12 = arith.shrsi %6, %11 : vector<4x256xi32>
    %c1_i32 = arith.constant 1 : i32
    %13 = vector.broadcast %c1_i32 : i32 to vector<4x256xi32>
    %14 = arith.andi %12, %13 : vector<4x256xi32>
    %c0_i32 = arith.constant 0 : i32
    %15 = vector.broadcast %c0_i32 : i32 to vector<4x256xi32>
    %16 = arith.cmpi sgt, %14, %15 : vector<4x256xi32>
    %cst_6 = arith.constant 0.000000e+00 : f32
    %17 = vector.broadcast %cst_6 : f32 to vector<4x256xf32>
    %18 = arith.subf %17, %10 : vector<4x256xf32>
    %19 = arith.select %16, %18, %10 : vector<4x256xi1>, vector<4x256xf32>
    %cst_7 = arith.constant 0.000000e+00 : f32
    %20 = vector.broadcast %cst_7 : f32 to vector<4x256xf32>
    %21 = arith.maximumf %19, %20 : vector<4x256xf32>
    %22 = math.absf %19 : vector<4x256xf32>
    %cst_8 = arith.constant 0.000000e+00 : f32
    %23 = vector.broadcast %cst_8 : f32 to vector<4x256xf32>
    %24 = arith.subf %23, %22 : vector<4x256xf32>
    %25 = math.exp %24 : vector<4x256xf32>
    %cst_9 = arith.constant 1.000000e+00 : f32
    %26 = vector.broadcast %cst_9 : f32 to vector<4x256xf32>
    %27 = arith.addf %26, %25 : vector<4x256xf32>
    %28 = math.log %27 : vector<4x256xf32>
    %29 = arith.addf %21, %28 : vector<4x256xf32>
    %30 = arith.subf %7, %29 : vector<4x256xf32>
    %c2_i32_10 = arith.constant 2 : i32
    %31 = vector.broadcast %c2_i32_10 : i32 to vector<4x256xi32>
    %32 = arith.shrsi %6, %31 : vector<4x256xi32>
    %c1_i32_11 = arith.constant 1 : i32
    %33 = vector.broadcast %c1_i32_11 : i32 to vector<4x256xi32>
    %34 = arith.cmpi slt, %32, %33 : vector<4x256xi32>
    %c0_12 = arith.constant 0 : index
    %c0_13 = arith.constant 0 : index
    %c256 = arith.constant 256 : index
    %35 = vector.load %arg3[%c0_12, %c0_13, %c256] : memref<1x4x1792xbf16, #tpu.memory_space<vmem>>, vector<1x4x256xbf16>
    %36 = vector.shape_cast %35 : vector<1x4x256xbf16> to vector<4x256xbf16>
    %37 = arith.extf %36 : vector<4x256xbf16> to vector<4x256xf32>
    %c0_14 = arith.constant 0 : index
    %c0_15 = arith.constant 0 : index
    %c512 = arith.constant 512 : index
    %38 = vector.load %arg3[%c0_14, %c0_15, %c512] : memref<1x4x1792xbf16, #tpu.memory_space<vmem>>, vector<1x4x256xbf16>
    %39 = vector.shape_cast %38 : vector<1x4x256xbf16> to vector<4x256xbf16>
    %40 = arith.extf %39 : vector<4x256xbf16> to vector<4x256xf32>
    %41 = arith.select %34, %37, %40 : vector<4x256xi1>, vector<4x256xf32>
    %c1_i32_16 = arith.constant 1 : i32
    %42 = vector.broadcast %c1_i32_16 : i32 to vector<4x256xi32>
    %43 = arith.shrsi %6, %42 : vector<4x256xi32>
    %c1_i32_17 = arith.constant 1 : i32
    %44 = vector.broadcast %c1_i32_17 : i32 to vector<4x256xi32>
    %45 = arith.andi %43, %44 : vector<4x256xi32>
    %c0_i32_18 = arith.constant 0 : i32
    %46 = vector.broadcast %c0_i32_18 : i32 to vector<4x256xi32>
    %47 = arith.cmpi sgt, %45, %46 : vector<4x256xi32>
    %cst_19 = arith.constant 0.000000e+00 : f32
    %48 = vector.broadcast %cst_19 : f32 to vector<4x256xf32>
    %49 = arith.subf %48, %41 : vector<4x256xf32>
    %50 = arith.select %47, %49, %41 : vector<4x256xi1>, vector<4x256xf32>
    %cst_20 = arith.constant 0.000000e+00 : f32
    %51 = vector.broadcast %cst_20 : f32 to vector<4x256xf32>
    %52 = arith.maximumf %50, %51 : vector<4x256xf32>
    %53 = math.absf %50 : vector<4x256xf32>
    %cst_21 = arith.constant 0.000000e+00 : f32
    %54 = vector.broadcast %cst_21 : f32 to vector<4x256xf32>
    %55 = arith.subf %54, %53 : vector<4x256xf32>
    %56 = math.exp %55 : vector<4x256xf32>
    %cst_22 = arith.constant 1.000000e+00 : f32
    %57 = vector.broadcast %cst_22 : f32 to vector<4x256xf32>
    %58 = arith.addf %57, %56 : vector<4x256xf32>
    %59 = math.log %58 : vector<4x256xf32>
    %60 = arith.addf %52, %59 : vector<4x256xf32>
    %61 = arith.subf %30, %60 : vector<4x256xf32>
    %c1_i32_23 = arith.constant 1 : i32
    %62 = vector.broadcast %c1_i32_23 : i32 to vector<4x256xi32>
    %63 = arith.shrsi %6, %62 : vector<4x256xi32>
    %c2_i32_24 = arith.constant 2 : i32
    %64 = vector.broadcast %c2_i32_24 : i32 to vector<4x256xi32>
    %65 = arith.cmpi slt, %63, %64 : vector<4x256xi32>
    %c1_i32_25 = arith.constant 1 : i32
    %66 = vector.broadcast %c1_i32_25 : i32 to vector<4x256xi32>
    %67 = arith.cmpi slt, %63, %66 : vector<4x256xi32>
    %c0_26 = arith.constant 0 : index
    %c0_27 = arith.constant 0 : index
    %c768 = arith.constant 768 : index
    %68 = vector.load %arg3[%c0_26, %c0_27, %c768] : memref<1x4x1792xbf16, #tpu.memory_space<vmem>>, vector<1x4x256xbf16>
    %69 = vector.shape_cast %68 : vector<1x4x256xbf16> to vector<4x256xbf16>
    %70 = arith.extf %69 : vector<4x256xbf16> to vector<4x256xf32>
    %c0_28 = arith.constant 0 : index
    %c0_29 = arith.constant 0 : index
    %c1024 = arith.constant 1024 : index
    %71 = vector.load %arg3[%c0_28, %c0_29, %c1024] : memref<1x4x1792xbf16, #tpu.memory_space<vmem>>, vector<1x4x256xbf16>
    %72 = vector.shape_cast %71 : vector<1x4x256xbf16> to vector<4x256xbf16>
    %73 = arith.extf %72 : vector<4x256xbf16> to vector<4x256xf32>
    %74 = arith.select %67, %70, %73 : vector<4x256xi1>, vector<4x256xf32>
    %c3_i32 = arith.constant 3 : i32
    %75 = vector.broadcast %c3_i32 : i32 to vector<4x256xi32>
    %76 = arith.cmpi slt, %63, %75 : vector<4x256xi32>
    %c0_30 = arith.constant 0 : index
    %c0_31 = arith.constant 0 : index
    %c1280 = arith.constant 1280 : index
    %77 = vector.load %arg3[%c0_30, %c0_31, %c1280] : memref<1x4x1792xbf16, #tpu.memory_space<vmem>>, vector<1x4x256xbf16>
    %78 = vector.shape_cast %77 : vector<1x4x256xbf16> to vector<4x256xbf16>
    %79 = arith.extf %78 : vector<4x256xbf16> to vector<4x256xf32>
    %c0_32 = arith.constant 0 : index
    %c0_33 = arith.constant 0 : index
    %c1536 = arith.constant 1536 : index
    %80 = vector.load %arg3[%c0_32, %c0_33, %c1536] : memref<1x4x1792xbf16, #tpu.memory_space<vmem>>, vector<1x4x256xbf16>
    %81 = vector.shape_cast %80 : vector<1x4x256xbf16> to vector<4x256xbf16>
    %82 = arith.extf %81 : vector<4x256xbf16> to vector<4x256xf32>
    %83 = arith.select %76, %79, %82 : vector<4x256xi1>, vector<4x256xf32>
    %84 = arith.select %65, %74, %83 : vector<4x256xi1>, vector<4x256xf32>
    %c0_i32_34 = arith.constant 0 : i32
    %85 = vector.broadcast %c0_i32_34 : i32 to vector<4x256xi32>
    %86 = arith.shrsi %6, %85 : vector<4x256xi32>
    %c1_i32_35 = arith.constant 1 : i32
    %87 = vector.broadcast %c1_i32_35 : i32 to vector<4x256xi32>
    %88 = arith.andi %86, %87 : vector<4x256xi32>
    %c0_i32_36 = arith.constant 0 : i32
    %89 = vector.broadcast %c0_i32_36 : i32 to vector<4x256xi32>
    %90 = arith.cmpi sgt, %88, %89 : vector<4x256xi32>
    %cst_37 = arith.constant 0.000000e+00 : f32
    %91 = vector.broadcast %cst_37 : f32 to vector<4x256xf32>
    %92 = arith.subf %91, %84 : vector<4x256xf32>
    %93 = arith.select %90, %92, %84 : vector<4x256xi1>, vector<4x256xf32>
    %cst_38 = arith.constant 0.000000e+00 : f32
    %94 = vector.broadcast %cst_38 : f32 to vector<4x256xf32>
    %95 = arith.maximumf %93, %94 : vector<4x256xf32>
    %96 = math.absf %93 : vector<4x256xf32>
    %cst_39 = arith.constant 0.000000e+00 : f32
    %97 = vector.broadcast %cst_39 : f32 to vector<4x256xf32>
    %98 = arith.subf %97, %96 : vector<4x256xf32>
    %99 = math.exp %98 : vector<4x256xf32>
    %cst_40 = arith.constant 1.000000e+00 : f32
    %100 = vector.broadcast %cst_40 : f32 to vector<4x256xf32>
    %101 = arith.addf %100, %99 : vector<4x256xf32>
    %102 = math.log %101 : vector<4x256xf32>
    %103 = arith.addf %95, %102 : vector<4x256xf32>
    %104 = arith.subf %61, %103 : vector<4x256xf32>
    %c0_41 = arith.constant 0 : index
    %c0_42 = arith.constant 0 : index
    %c0_43 = arith.constant 0 : index
    %c0_44 = arith.constant 0 : index
    %105 = vector.load %arg4[%c0_41, %c0_42, %c0_43, %c0_44] : memref<1x1x4x256xf32, #tpu.memory_space<vmem>>, vector<1x1x4x256xf32>
    %106 = vector.shape_cast %105 : vector<1x1x4x256xf32> to vector<4x256xf32>
    %107 = vector.shape_cast %104 : vector<4x256xf32> to vector<1x1x4x256xf32>
    tpu.vector_store %arg4[%c0_41, %c0_42, %c0_43, %c0_44], %107 {strides = array<i32>} : memref<1x1x4x256xf32, #tpu.memory_space<vmem>>, vector<1x1x4x256xf32>,
    return
  }
  func.func @transform_0(%arg0: i32, %arg1: i32) -> (i32, i32, i32) {
    %c0_i32 = arith.constant 0 : i32
    %c0_i32_0 = arith.constant 0 : i32
    return %arg0, %arg1, %c0_i32 : i32, i32, i32
  }
  func.func @transform_1(%arg0: i32, %arg1: i32) -> (i32, i32, i32) {
    %c0_i32 = arith.constant 0 : i32
    %c0_i32_0 = arith.constant 0 : i32
    return %arg0, %arg1, %c0_i32 : i32, i32, i32
  }
  func.func @transform_2(%arg0: i32, %arg1: i32) -> (i32, i32, i32, i32) {
    %c0_i32 = arith.constant 0 : i32
    %c0_i32_0 = arith.constant 0 : i32
    %c0_i32_1 = arith.constant 0 : i32
    return %arg0, %arg1, %c0_i32, %c0_i32_0 : i32, i32, i32, i32
  }
}

</mosaic_0001>

<llo_original>
// kernel: tpu_custom_call.1
$region0: #{tpu_custom_call.1}
  #allocation0 [shape = 'u32[]', space=smem, size = 0x4, offset = 0x4, fixed_abs, tag = 'smem constant byte address 0x4 - core index']
  #allocation1 [shape = 'u32[144,128]{1,0:T(1,128)}', space=vmem, size = 0x12000, scoped, tag = 'internal scratch']
  %s0 = inlined_call_operand.hbm [shape: f32[2,4,256], index: 0, kind: input, shape index: {}]
  %s1 = inlined_call_operand.hbm [shape: bf16[2,4,1792], index: 1, kind: input, shape index: {}]
  %s2 = inlined_call_operand.hbm [shape: f32[2,1,4,256], index: 2, kind: output, shape index: {}]
  %s3 = sld [smem:[#allocation0]]
  $region49: #{tpu_custom_call.1} parent=0
    _
  %s5 = ssub.s32 1, %s3
  %s6 = scalar_select 0, %s5, %s3
  $region1: #{tpu_custom_call.1} parent=0
    #allocation2 [shape = 'u8[8192]{0}', space=vmem, size = 0x2000, scoped, tag = 'input window, operand 0']
    #allocation3 [shape = 's32[2]{0}', space=sflag, size = 0x8, scoped, tag = 'scoped memory for tpu_custom_call.1']
    #allocation4 [shape = 's32[2]{0}', space=sflag, size = 0x8, scoped, tag = 'scoped memory for tpu_custom_call.1']
    #allocation5 [shape = 'u8[28672]{0}', space=vmem, size = 0x7000, scoped, tag = 'input window, operand 1']
    #allocation6 [shape = 's32[2]{0}', space=sflag, size = 0x8, scoped, tag = 'scoped memory for tpu_custom_call.1']
    #allocation7 [shape = 'u8[8192]{0}', space=vmem, size = 0x2000, scoped, tag = 'output window, operand 0']
    %7 = vsyncpa [#allocation3], 0
    %s8 = scalar_lea.sflag [#allocation3], 1
    %9 = vsyncpa %s8, 0
    %10 = vsyncpa [#allocation6], 0
    %s11 = scalar_lea.sflag [#allocation6], 1
    %12 = vsyncpa %s11, 0
    %13 = vsyncpa [#allocation4], 0
    %s14 = scalar_lea.sflag [#allocation4], 1
    %15 = vsyncpa %s14, 0
    loop: start=0, step=1, limit=4
    $region2: #{tpu_custom_call.1} parent=1 // loop_pre_header
      _
    $region3: #{tpu_custom_call.1} parent=1 // loop_header
      %s17 = sphi 0, %s21
      %p18 = scmp.ge.s32.totalorder %s17, 4
      %s24 = sphi 0, %s36
      %s25 = sphi 0, %s32
      %s26 = sphi 0, %s24
      %s27 = sphi 0, %s25
      %s28 = sphi 0, %s26
      %s29 = sphi 0, %s27
      %s41 = sphi 0, %s43
      %s44 = sphi 0, %s41
      %s45 = sphi 0, %s44
      %s61 = sphi 0, %s45
      %s69 = sphi 0, %s71
      %s72 = sphi 0, %s69
      %s73 = sphi 0, %s72
      %s89 = sphi 0, %s73
      %s97 = sphi 0, %s99
      %s100 = sphi 0, %s97
      %s101 = sphi 0, %s100
      %s117 = sphi 0, %s101
    $region4: #{tpu_custom_call.1} parent=1 // loop_header_branch
      %20 = sbr.rel (%p18) target = $region8
    $region5: #{tpu_custom_call.1} parent=1 // loop_body
      %s22 = ssub.s32 %s17, 1
      %s23 = ssub.s32 %s17, 2
      %s30 = sadd.s32 1, %s25
      %p31 = scmp.ge.s32.totalorder %s30, 1
      %s32 = scalar_select %p31, 0, %s30
      %s33 = sadd.s32 1, %s24
      %s34 = scalar_select %p31, %s33, %s24
      %p35 = scmp.ge.s32.totalorder %s34, 2
      %s36 = scalar_select %p35, 0, %s34
      %s37 = ssub.s32 %s24, %s36
      %s38 = ssub.s32 %s25, %s32
      %s39 = sor.u32 %s37, %s38
      %p40 = scmp.eq.s32.totalorder %s39, 0
      %s42 = sadd.s32 %s41, 1
      %s43 = scalar_select %p40, %s41, %s42
      %p46 = pneg %p40
      %p47 = scmp.eq.s32.totalorder %s17, 1
      %p48 = por %p46, %p47
      %p49 = scmp.ne.s32.totalorder %s41, %s44
      %p50 = scmp.eq.s32.totalorder %s17, 0
      %p51 = por %p49, %p50
      %p52 = scmp.ne.s32.totalorder %s41, %s44
      %p53 = scmp.eq.s32.totalorder %s22, 1
      %p54 = por %p52, %p53
      %p55 = scmp.ne.s32.totalorder %s44, %s45
      %p56 = scmp.eq.s32.totalorder %s22, 0
      %p57 = por %p55, %p56
      %p58 = scmp.ne.s32.totalorder %s44, %s45
      %p59 = scmp.eq.s32.totalorder %s23, 1
      %p60 = por %p58, %p59
      %p62 = scmp.ne.s32.totalorder %s45, %s61
      %p63 = scmp.eq.s32.totalorder %s23, 0
      %p64 = por %p62, %p63
      %s65 = ssub.s32 %s24, %s36
      %s66 = ssub.s32 %s25, %s32
      %s67 = sor.u32 %s65, %s66
      %p68 = scmp.eq.s32.totalorder %s67, 0
      %s70 = sadd.s32 %s69, 1
      %s71 = scalar_select %p68, %s69, %s70
      %p74 = pneg %p68
      %p75 = scmp.eq.s32.totalorder %s17, 1
      %p76 = por %p74, %p75
      %p77 = scmp.ne.s32.totalorder %s69, %s72
      %p78 = scmp.eq.s32.totalorder %s17, 0
      %p79 = por %p77, %p78
      %p80 = scmp.ne.s32.totalorder %s69, %s72
      %p81 = scmp.eq.s32.totalorder %s22, 1
      %p82 = por %p80, %p81
      %p83 = scmp.ne.s32.totalorder %s72, %s73
      %p84 = scmp.eq.s32.totalorder %s22, 0
      %p85 = por %p83, %p84
      %p86 = scmp.ne.s32.totalorder %s72, %s73
      %p87 = scmp.eq.s32.totalorder %s23, 1
      %p88 = por %p86, %p87
      %p90 = scmp.ne.s32.totalorder %s73, %s89
      %p91 = scmp.eq.s32.totalorder %s23, 0
      %p92 = por %p90, %p91
      %s93 = ssub.s32 %s24, %s36
      %s94 = ssub.s32 %s25, %s32
      %s95 = sor.u32 %s93, %s94
      %p96 = scmp.eq.s32.totalorder %s95, 0
      %s98 = sadd.s32 %s97, 1
      %s99 = scalar_select %p96, %s97, %s98
      %p102 = pneg %p96
      %p103 = scmp.eq.s32.totalorder %s17, 1
      %p104 = por %p102, %p103
      %p105 = scmp.ne.s32.totalorder %s97, %s100
      %p106 = scmp.eq.s32.totalorder %s17, 0
      %p107 = por %p105, %p106
      %p108 = scmp.ne.s32.totalorder %s97, %s100
      %p109 = scmp.eq.s32.totalorder %s22, 1
      %p110 = por %p108, %p109
      %p111 = scmp.ne.s32.totalorder %s100, %s101
      %p112 = scmp.eq.s32.totalorder %s22, 0
      %p113 = por %p111, %p112
      %p114 = scmp.ne.s32.totalorder %s100, %s101
      %p115 = scmp.eq.s32.totalorder %s23, 1
      %p116 = por %p114, %p115
      %p118 = scmp.ne.s32.totalorder %s101, %s117
      %p119 = scmp.eq.s32.totalorder %s23, 0
      %p120 = por %p118, %p119
      %p121 = scmp.le.s32.totalorder 1, %s17
      %p122 = scmp.lt.s32.totalorder %s17, 3
      %p123 = pnand %p121, %p122
      %p124 = pneg %p123
      // Predicated region
      $region9: #{tpu_custom_call.1} parent=5 // pred_check
        _
      $region10: #{tpu_custom_call.1} parent=5 // pred_check_branch
        %126 = sbr.rel (%p123) target = $region12
      $region11: #{tpu_custom_call.1} parent=5 // pred_region
        %s127 = ssub.s32 %s17, 1
      $region12: #{tpu_custom_call.1} parent=5 // pred_fallthru
        _
      %p128 = scmp.lt.s32.totalorder %s17, 2
      // Predicated region
      $region13: #{tpu_custom_call.1} parent=5 // pred_check
        %p129 = pneg %p128
      $region14: #{tpu_custom_call.1} parent=5 // pred_check_branch
        %131 = sbr.rel (%p129) target = $region16
      $region15: #{tpu_custom_call.1} parent=5 // pred_region
        // Predicated region
        $region17: #{tpu_custom_call.1} parent=15 // pred_check
          %p132 = pneg %p51
        $region18: #{tpu_custom_call.1} parent=15 // pred_check_branch
          %134 = sbr.rel (%p132) target = $region20
        $region19: #{tpu_custom_call.1} parent=15 // pred_region
          %s135 = sand.u32 %s41, 1
          %s136 = scalar_lea.sflag [#allocation3], %s135
          %s137 = sand.u32 %s41, 1
          %s138 = smul.addr %s137, 8
          %s139 = scalar_lea.vmem [#allocation2], %s138
          %s141 = ssub.s32 128, 128
          %142 = vsyncadd %s136, %s141
          %s143 = smul.addr %s25, 2
          %s144 = smul.addr %s24, 2
          %s145 = sadd.s32 %s143, %s144
          %s146 = smul.addr %s145, 64
          %s147 = scalar_lea.hbm %s0, %s146
          %s149 = sshll.u32 %s139, 4
          %s150 = int_to_ptr.vmem [resolvable:$true] %s149
          %152 = dma.hbm_to_vmem [thread:$0]  %s147, 128, %s150, %s136
        $region20: #{tpu_custom_call.1} parent=15 // pred_fallthru
          _
        // Predicated region
        $region21: #{tpu_custom_call.1} parent=15 // pred_check
          %p153 = pneg %p79
        $region22: #{tpu_custom_call.1} parent=15 // pred_check_branch
          %155 = sbr.rel (%p153) target = $region24
        $region23: #{tpu_custom_call.1} parent=15 // pred_region
          %s156 = sand.u32 %s69, 1
          %s157 = scalar_lea.sflag [#allocation6], %s156
          %s158 = sand.u32 %s69, 1
          %s159 = smul.addr %s158, 28
          %s160 = scalar_lea.vmem [#allocation5], %s159
          %s162 = ssub.s32 448, 448
          %163 = vsyncadd %s157, %s162
          %s164 = smul.addr %s25, 14
          %s165 = smul.addr %s24, 14
          %s166 = sadd.s32 %s164, %s165
          %s167 = smul.addr %s166, 32
          %s168 = scalar_lea.hbm %s1, %s167
          %s170 = sshll.u32 %s160, 4
          %s171 = int_to_ptr.vmem [resolvable:$true] %s170
          %173 = dma.hbm_to_vmem [thread:$0]  %s168, 448, %s171, %s157
        $region24: #{tpu_custom_call.1} parent=15 // pred_fallthru
          _
      $region16: #{tpu_custom_call.1} parent=5 // pred_fallthru
        _
      %p174 = scmp.le.s32.totalorder 1, %s17
      %p175 = scmp.lt.s32.totalorder %s17, 3
      %p176 = pnand %p174, %p175
      %p177 = pneg %p176
      // Predicated region
      $region25: #{tpu_custom_call.1} parent=5 // pred_check
        _
      $region26: #{tpu_custom_call.1} parent=5 // pred_check_branch
        %179 = sbr.rel (%p176) target = $region28
      $region27: #{tpu_custom_call.1} parent=5 // pred_region
        %s180 = ssub.s32 %s17, 1
        %s181 = sand.u32 %s44, 1
        %s182 = scalar_lea.sflag [#allocation3], %s181
        %s183 = sand.u32 %s44, 1
        %s184 = smul.addr %s183, 8
        %s185 = scalar_lea.vmem [#allocation2], %s184
        // Predicated region
        $region29: #{tpu_custom_call.1} parent=27 // pred_check
          %p186 = pneg %p57
        $region30: #{tpu_custom_call.1} parent=27 // pred_check_branch
          %188 = sbr.rel (%p186) target = $region32
        $region31: #{tpu_custom_call.1} parent=27 // pred_region
          %189 = dma.done %s182, 128
        $region32: #{tpu_custom_call.1} parent=27 // pred_fallthru
          _
        %s190 = sand.u32 %s72, 1
        %s191 = scalar_lea.sflag [#allocation6], %s190
        %s192 = sand.u32 %s72, 1
        %s193 = smul.addr %s192, 28
        %s194 = scalar_lea.vmem [#allocation5], %s193
        // Predicated region
        $region33: #{tpu_custom_call.1} parent=27 // pred_check
          %p195 = pneg %p85
        $region34: #{tpu_custom_call.1} parent=27 // pred_check_branch
          %197 = sbr.rel (%p195) target = $region36
        $region35: #{tpu_custom_call.1} parent=27 // pred_region
          %198 = dma.done %s191, 448
        $region36: #{tpu_custom_call.1} parent=27 // pred_fallthru
          _
        %s199 = sand.u32 %s44, 1
        %s200 = scalar_lea.sflag [#allocation3], %s199
        %s201 = sand.u32 %s44, 1
        %s202 = smul.addr %s201, 8
        %s203 = scalar_lea.vmem [#allocation2], %s202
        %p204 = pneg %p57
        %p205 = pneg %p54
        %s206 = sand.u32 %s72, 1
        %s207 = scalar_lea.sflag [#allocation6], %s206
        %s208 = sand.u32 %s72, 1
        %s209 = smul.addr %s208, 28
        %s210 = scalar_lea.vmem [#allocation5], %s209
        %p211 = pneg %p85
        %p212 = pneg %p82
        %p213 = pneg %p113
        %p214 = pneg %p110
        %s215 = sand.u32 %s100, 1
        %s216 = scalar_lea.sflag [#allocation4], %s215
        %s217 = sand.u32 %s100, 1
        %s218 = smul.addr %s217, 8
        %s219 = scalar_lea.vmem [#allocation7], %s218
        %v220 = vld [vmem:[%s185] sm:$0xff]
        %v221 = vmul.f32 %v220, 8.0
        %v222 = vcvt.f32.s32.to.zero.pseudo %v221
        %v223 = vand.u32 %v222, 7
        %v224 = vld [vmem:[%s194] sm:$0xf]
        %v225 = vunpack.c.l.bf16 %v224
        %v226 = vshra.s32 %v223, 2
        %v227 = vand.u32 %v226, 1
        %vm228 = vcmp.gt.s32.totalorder %v227, 0
        %v229 = vsub.f32 0.0, %v225
        %v230 = vsel %vm228, %v229, %v225
        %v231 = vmax.f32 %v230, 0.0
        %v232 = vand.u32 2147483647, %v230
        %v233 = vsub.f32 0.0, %v232
        %v234 = vmul.f32 %v233, 1.442695
        %v235 = vpow.pop %v234
        %v236 = vadd.f32 %v235, 1.0
        %v237 = vlog2.pop %v236
        %v238 = vmul.f32 %v237, 0.6931472
        %v239 = vadd.f32 %v231, %v238
        %v240 = vsub.f32 0.0, %v239
        %vm241 = vcmp.lt.s32.totalorder %v226, 1
        %v242 = vld [vmem:[%s194 + $0x4] sm:$0xf]
        %v243 = vunpack.c.l.bf16 %v242
        %v244 = vld [vmem:[%s194 + $0x8] sm:$0xf]
        %v245 = vunpack.c.l.bf16 %v244
        %v246 = vsel %vm241, %v243, %v245
        %v247 = vshra.s32 %v223, 1
        %v248 = vand.u32 %v247, 1
        %vm249 = vcmp.gt.s32.totalorder %v248, 0
        %v250 = vsub.f32 0.0, %v246
        %v251 = vsel %vm249, %v250, %v246
        %v252 = vmax.f32 %v251, 0.0
        %v253 = vand.u32 2147483647, %v251
        %v254 = vsub.f32 0.0, %v253
        %v255 = vmul.f32 %v254, 1.442695
        %v256 = vpow.pop %v255
        %v257 = vadd.f32 %v256, 1.0
        %v258 = vlog2.pop %v257
        %v259 = vmul.f32 %v258, 0.6931472
        %v260 = vadd.f32 %v252, %v259
        %v261 = vsub.f32 %v240, %v260
        %vm262 = vcmp.lt.s32.totalorder %v247, 2
        %vm263 = vcmp.lt.s32.totalorder %v247, 1
        %v264 = vld [vmem:[%s194 + $0xc] sm:$0xf]
        %v265 = vunpack.c.l.bf16 %v264
        %v266 = vld [vmem:[%s194 + $0x10] sm:$0xf]
        %v267 = vunpack.c.l.bf16 %v266
        %v268 = vsel %vm263, %v265, %v267
        %vm269 = vcmp.lt.s32.totalorder %v247, 3
        %v270 = vld [vmem:[%s194 + $0x14] sm:$0xf]
        %v271 = vunpack.c.l.bf16 %v270
        %v272 = vld [vmem:[%s194 + $0x18] sm:$0xf]
        %v273 = vunpack.c.l.bf16 %v272
        %v274 = vsel %vm269, %v271, %v273
        %v275 = vsel %vm262, %v268, %v274
        %v276 = vand.u32 %v223, 1
        %vm277 = vcmp.gt.s32.totalorder %v276, 0
        %v278 = vsub.f32 0.0, %v275
        %v279 = vsel %vm277, %v278, %v275
        %v280 = vmax.f32 %v279, 0.0
        %v281 = vand.u32 2147483647, %v279
        %v282 = vsub.f32 0.0, %v281
        %v283 = vmul.f32 %v282, 1.442695
        %v284 = vpow.pop %v283
        %v285 = vadd.f32 %v284, 1.0
        %v286 = vlog2.pop %v285
        %v287 = vmul.f32 %v286, 0.6931472
        %v288 = vadd.f32 %v280, %v287
        %v289 = vsub.f32 %v261, %v288
        %290 = vst [vmem:[%s219] sm:$0xff] %v289
        %s291 = sand.u32 %s100, 1
        %s292 = scalar_lea.sflag [#allocation4], %s291
        %s293 = sand.u32 %s100, 1
        %s294 = smul.addr %s293, 8
        %s295 = scalar_lea.vmem [#allocation7], %s294
        // Predicated region
        $region37: #{tpu_custom_call.1} parent=27 // pred_check
          %p296 = pneg %p110
        $region38: #{tpu_custom_call.1} parent=27 // pred_check_branch
          %298 = sbr.rel (%p296) target = $region40
        $region39: #{tpu_custom_call.1} parent=27 // pred_region
          %s300 = ssub.s32 128, 128
          %301 = vsyncadd %s292, %s300
          %s302 = smul.addr %s27, 2
          %s303 = smul.addr %s26, 2
          %s304 = sadd.s32 %s302, %s303
          %s305 = smul.addr %s304, 64
          %s306 = scalar_lea.hbm %s2, %s305
          %s308 = sshll.u32 %s295, 4
          %s309 = int_to_ptr.vmem [resolvable:$true] %s308
          %311 = dma.vmem_to_hbm [thread:$0]  %s309, 128, %s306, %s292
        $region40: #{tpu_custom_call.1} parent=27 // pred_fallthru
          _
      $region28: #{tpu_custom_call.1} parent=5 // pred_fallthru
        _
      %p312 = scmp.le.s32.totalorder 2, %s17
      // Predicated region
      $region41: #{tpu_custom_call.1} parent=5 // pred_check
        %p313 = pneg %p312
      $region42: #{tpu_custom_call.1} parent=5 // pred_check_branch
        %315 = sbr.rel (%p313) target = $region44
      $region43: #{tpu_custom_call.1} parent=5 // pred_region
        %s316 = ssub.s32 %s17, 2
        // Predicated region
        $region45: #{tpu_custom_call.1} parent=43 // pred_check
          %p317 = pneg %p116
        $region46: #{tpu_custom_call.1} parent=43 // pred_check_branch
          %319 = sbr.rel (%p317) target = $region48
        $region47: #{tpu_custom_call.1} parent=43 // pred_region
          %s320 = sand.u32 %s101, 1
          %s321 = scalar_lea.sflag [#allocation4], %s320
          %s322 = sand.u32 %s101, 1
          %s323 = smul.addr %s322, 8
          %s324 = scalar_lea.vmem [#allocation7], %s323
          %325 = dma.done %s321, 128
        $region48: #{tpu_custom_call.1} parent=43 // pred_fallthru
          _
      $region44: #{tpu_custom_call.1} parent=5 // pred_fallthru
        _
    $region6: #{tpu_custom_call.1} parent=1 // loop_footer
      %s21 = sadd.s32 1, %s17
    $region7: #{tpu_custom_call.1} parent=1 // loop_footer_branch
      %16 = sbr.rel target = $region3
    $region8: #{tpu_custom_call.1} parent=1 // loop_exit
      _
    %326 = vsyncpa [#allocation3], 1
    %s327 = scalar_lea.sflag [#allocation3], 1
    %328 = vsyncpa %s327, 1
    %329 = vsyncpa [#allocation6], 1
    %s330 = scalar_lea.sflag [#allocation6], 1
    %331 = vsyncpa %s330, 1
    %332 = vsyncpa [#allocation4], 1
    %s333 = scalar_lea.sflag [#allocation4], 1
    %334 = vsyncpa %s333, 1

</llo_original>
